<compile_context>
chip_gen: v6e
topology: v6e:2x2x1
jax: 0.10.0
libtpu: 0.0.40
codegen_flags: <defaults>
</compile_context>

<pallas_src>
import jax
import jax.numpy as jnp
from jax.experimental import pallas as pl
from jax.experimental.pallas import tpu as pltpu


def class_embedding_kernel(c_ref,                # VMEM [tb, 1] int32 class indices
                           emb_tbl_ref,          # VMEM [num_classes, 4C] bf16
                           w1_ref, b1_ref,       # [4C,4C] bf16, [1,4C] f32
                           w2_ref, b2_ref,       # [4C,2C] bf16, [1,2C] f32
                           w3_ref, b3_ref,       # [2C, C] bf16, [1, C] f32
                           gamma_ref, beta_ref,  # [1, C] f32
                           o_ref):               # VMEM [tb, C] f32 (this batch block)
    tb = o_ref.shape[0]
    num_classes = emb_tbl_ref.shape[0]

    # Vectorized embedding lookup: one-hot (tb, num_classes) @ table.
    # Exact: every output row is a single bf16 table row (selection + cast are exact).
    classes = jax.lax.broadcasted_iota(jnp.int32, (tb, num_classes), 1)
    one_hot = (c_ref[...] == classes).astype(jnp.float32)
    x = jnp.dot(one_hot, emb_tbl_ref[...].astype(jnp.float32),
                preferred_element_type=jnp.float32).astype(w1_ref.dtype)   # bf16 for MXU

    # lin1 + Swish  (bf16 x bf16 -> f32 accumulation)
    h = jnp.dot(x, w1_ref[...], preferred_element_type=jnp.float32) + b1_ref[...]
    h = h * jax.nn.sigmoid(h)

    # lin2 + Swish
    h = jnp.dot(h.astype(w2_ref.dtype), w2_ref[...],
                preferred_element_type=jnp.float32) + b2_ref[...]
    h = h * jax.nn.sigmoid(h)

    # lin3
    h = jnp.dot(h.astype(w3_ref.dtype), w3_ref[...],
                preferred_element_type=jnp.float32) + b3_ref[...]

    # LayerNorm over the last dim (biased variance, eps=1e-5, affine) == nn.LayerNorm.
    mean = jnp.mean(h, axis=-1, keepdims=True)
    var = jnp.mean((h - mean) * (h - mean), axis=-1, keepdims=True)
    y = (h - mean) * jax.lax.rsqrt(var + 1e-5)
    o_ref[...] = (y * gamma_ref[...] + beta_ref[...]).astype(o_ref.dtype)


def class_embedding_forward(c, params, *, max_block_b=256):
    """c: int class indices [B]. Returns [B, n_channels] float32."""
    emb_tbl = params["embedding"]                # [num_classes, 4C] bf16
    w1, b1 = params["w1"], params["b1"]
    w2, b2 = params["w2"], params["b2"]
    w3, b3 = params["w3"], params["b3"]
    gamma, beta = params["gamma"], params["beta"]

    B = c.shape[0]
    num_classes, C4 = emb_tbl.shape
    C2 = w2.shape[1]                             # 2C (w2 stored transposed: [4C, 2C])
    C = w3.shape[1]                              # C  (w3 stored transposed: [2C, C])

    # Collapse the grid for small batches; >=256 rows per step for large batches.
    if B <= max_block_b:
        block_b = B
    else:
        assert B % max_block_b == 0, "wrapper assumes batch divisible by max_block_b"
        block_b = max_block_b
    nb = B // block_b

    c2d = c.astype(jnp.int32).reshape(B, 1)      # class column, normal VMEM input

    def const_spec(shape):                       # VMEM-resident across all grid steps
        return pl.BlockSpec(shape, lambda i: (0,) * len(shape))

    in_specs = [
        pl.BlockSpec((block_b, 1), lambda i: (i, 0)),      # class indices
        const_spec((num_classes, C4)),                     # embedding table
        const_spec((C4, C4)), const_spec((1, C4)),         # w1, b1
        const_spec((C4, C2)), const_spec((1, C2)),         # w2, b2
        const_spec((C2, C)),  const_spec((1, C)),          # w3, b3
        const_spec((1, C)),   const_spec((1, C)),          # gamma, beta
    ]
    out_spec = pl.BlockSpec((block_b, C), lambda i: (i, 0))

    flops = 2 * B * (num_classes * C4 + C4 * C4 + C4 * C2 + C2 * C)
    transcendentals = B * (C4 + C2 + 1)          # two Swish sigmoids + rsqrt
    bytes_accessed = (int(c2d.nbytes)
                      + sum(int(a.nbytes) for a in
                            (emb_tbl, w1, b1, w2, b2, w3, b3, gamma, beta))
                      + B * C * 4)

    out = pl.pallas_call(
        class_embedding_kernel,
        out_shape=jax.ShapeDtypeStruct((B, C), jnp.float32),
        grid=(nb,),
        in_specs=in_specs,
        out_specs=out_spec,
        compiler_params=pltpu.CompilerParams(
            dimension_semantics=("parallel",) if nb > 1 else ("arbitrary",)),
        cost_estimate=pl.CostEstimate(flops=flops,
                                      transcendentals=transcendentals,
                                      bytes_accessed=bytes_accessed),
    )(c2d, emb_tbl, w1, b1, w2, b2, w3, b3, gamma, beta)
    return out


def init_params(key, num_classes=2, n_channels=32):
    """Synthetic parameters matching ClassEmbedding shapes / PyTorch-style init.
    PyTorch Linear stores W as [out, in]; we store W^T so the kernel does x @ W."""
    C = n_channels
    ks = jax.random.split(key, 8)

    def lin(kw, kb, out_dim, in_dim):
        bound = 1.0 / (in_dim ** 0.5)
        W = jax.random.uniform(kw, (out_dim, in_dim), jnp.float32, -bound, bound)
        b = jax.random.uniform(kb, (out_dim,), jnp.float32, -bound, bound)
        return W.T.astype(jnp.bfloat16), b.reshape(1, out_dim)   # bf16 weight, f32 bias

    w1, b1 = lin(ks[1], ks[2], 4 * C, 4 * C)
    w2, b2 = lin(ks[3], ks[4], 2 * C, 4 * C)
    w3, b3 = lin(ks[5], ks[6], C, 2 * C)

    return {
        # bf16 table: reference casts to bf16 before lin1 anyway -> identical numerics
        "embedding": jax.random.normal(ks[0], (num_classes, 4 * C),
                                       jnp.float32).astype(jnp.bfloat16),
        "w1": w1, "b1": b1,
        "w2": w2, "b2": b2,
        "w3": w3, "b3": b3,
        "gamma": jnp.ones((1, C), jnp.float32),   # LayerNorm weight init = 1
        "beta": jnp.zeros((1, C), jnp.float32),   # LayerNorm bias init = 0
    }


def reference_forward(c, params):
    """Pure-JAX reference mirroring the kernel's mixed precision (bf16 in, f32 acc)."""
    emb = params["embedding"][c]                 # bf16 rows
    h = jnp.dot(emb, params["w1"], preferred_element_type=jnp.float32) + params["b1"]
    h = h * jax.nn.sigmoid(h)
    h = jnp.dot(h.astype(jnp.bfloat16), params["w2"],
                preferred_element_type=jnp.float32) + params["b2"]
    h = h * jax.nn.sigmoid(h)
    h = jnp.dot(h.astype(jnp.bfloat16), params["w3"],
                preferred_element_type=jnp.float32) + params["b3"]
    mean = jnp.mean(h, axis=-1, keepdims=True)
    var = jnp.mean((h - mean) ** 2, axis=-1, keepdims=True)
    return (h - mean) * jax.lax.rsqrt(var + 1e-5) * params["gamma"] + params["beta"]


if __name__ == "__main__":
    key = jax.random.PRNGKey(0)
    k_param, k_cls = jax.random.split(key)

    num_classes, n_channels, batch = 2, 32, 16
    params = init_params(k_param, num_classes=num_classes, n_channels=n_channels)
    c = jax.random.randint(k_cls, (batch,), 0, num_classes, dtype=jnp.int32)

    out = class_embedding_forward(c, params)
    out = jax.block_until_ready(out)

    ref = reference_forward(c, params)
    assert out.shape == (batch, n_channels)
    assert bool(jnp.all(jnp.isfinite(out)))
    # bf16 weights/table => compare against a same-precision reference (not f32-exact torch)
    assert jnp.allclose(out, ref, atol=1e-3, rtol=1e-3), \
        float(jnp.max(jnp.abs(out - ref)))

    print("KERNEL_OK")
</pallas_src>

<mosaic_0001>
module attributes {stable_mosaic.version = 11 : i64} {
  func.func @class_embedding_kernel(%arg0: i32, %arg1: memref<16x1xi32, #tpu.memory_space<vmem>>, %arg2: memref<2x128xbf16, #tpu.memory_space<vmem>>, %arg3: memref<128x128xbf16, #tpu.memory_space<vmem>>, %arg4: memref<1x128xf32, #tpu.memory_space<vmem>>, %arg5: memref<128x64xbf16, #tpu.memory_space<vmem>>, %arg6: memref<1x64xf32, #tpu.memory_space<vmem>>, %arg7: memref<64x32xbf16, #tpu.memory_space<vmem>>, %arg8: memref<1x32xf32, #tpu.memory_space<vmem>>, %arg9: memref<1x32xf32, #tpu.memory_space<vmem>>, %arg10: memref<1x32xf32, #tpu.memory_space<vmem>>, %arg11: memref<16x32xf32, #tpu.memory_space<vmem>>) attributes {dimension_semantics = [#tpu.dimension_semantics<arbitrary>], iteration_bounds = array<i64: 1>, scalar_prefetch = 0 : i64, scratch_operands = 0 : i64, tpu.core_type = #tpu.core_type<tc>, window_params = [{transform_indices = @transform_0, window_bounds = array<i64: 16, 1>}, {pipeline_mode = #tpu.pipeline_mode<synchronous>, transform_indices = @transform_1, window_bounds = array<i64: 2, 128>}, {pipeline_mode = #tpu.pipeline_mode<synchronous>, transform_indices = @transform_2, window_bounds = array<i64: 128, 128>}, {pipeline_mode = #tpu.pipeline_mode<synchronous>, transform_indices = @transform_3, window_bounds = array<i64: 1, 128>}, {pipeline_mode = #tpu.pipeline_mode<synchronous>, transform_indices = @transform_4, window_bounds = array<i64: 128, 64>}, {pipeline_mode = #tpu.pipeline_mode<synchronous>, transform_indices = @transform_5, window_bounds = array<i64: 1, 64>}, {pipeline_mode = #tpu.pipeline_mode<synchronous>, transform_indices = @transform_6, window_bounds = array<i64: 64, 32>}, {pipeline_mode = #tpu.pipeline_mode<synchronous>, transform_indices = @transform_7, window_bounds = array<i64: 1, 32>}, {pipeline_mode = #tpu.pipeline_mode<synchronous>, transform_indices = @transform_8, window_bounds = array<i64: 1, 32>}, {pipeline_mode = #tpu.pipeline_mode<synchronous>, transform_indices = @transform_9, window_bounds = array<i64: 1, 32>}, {transform_indices = @transform_10, window_bounds = array<i64: 16, 32>}]} {
    %0 = tpu.iota {dimensions = array<i32: 1>} : vector<16x2xi32>
    %c0 = arith.constant 0 : index
    %c0_0 = arith.constant 0 : index
    %1 = vector.load %arg1[%c0, %c0_0] : memref<16x1xi32, #tpu.memory_space<vmem>>, vector<16x1xi32>
    %2 = vector.broadcast %1 : vector<16x1xi32> to vector<16x2xi32>
    %3 = arith.cmpi eq, %2, %0 : vector<16x2xi32>
    %4 = arith.extui %3 : vector<16x2xi1> to vector<16x2xi32>
    %5 = arith.sitofp %4 : vector<16x2xi32> to vector<16x2xf32>
    %c0_1 = arith.constant 0 : index
    %c0_2 = arith.constant 0 : index
    %6 = vector.load %arg2[%c0_1, %c0_2] : memref<2x128xbf16, #tpu.memory_space<vmem>>, vector<2x128xbf16>
    %7 = arith.extf %6 : vector<2x128xbf16> to vector<2x128xf32>
    %cst = arith.constant dense<0.000000e+00> : vector<16x128xf32>
    %8 = tpu.matmul %5, %7, %cst {dimension_numbers = #tpu.dot_dimension_numbers<[1], [0], [0], [1], [0, 0, 1, 1], [], []>} : vector<16x2xf32>, vector<2x128xf32>, vector<16x128xf32> -> vector<16x128xf32>
    %9 = arith.truncf %8 : vector<16x128xf32> to vector<16x128xbf16>
    %c0_3 = arith.constant 0 : index
    %c0_4 = arith.constant 0 : index
    %10 = vector.load %arg3[%c0_3, %c0_4] : memref<128x128xbf16, #tpu.memory_space<vmem>>, vector<128x128xbf16>
    %cst_5 = arith.constant dense<0.000000e+00> : vector<16x128xf32>
    %11 = tpu.matmul %9, %10, %cst_5 {dimension_numbers = #tpu.dot_dimension_numbers<[1], [0], [0], [1], [0, 0, 1, 1], [], []>} : vector<16x128xbf16>, vector<128x128xbf16>, vector<16x128xf32> -> vector<16x128xf32>
    %c0_6 = arith.constant 0 : index
    %c0_7 = arith.constant 0 : index
    %12 = vector.load %arg4[%c0_6, %c0_7] : memref<1x128xf32, #tpu.memory_space<vmem>>, vector<1x128xf32>
    %13 = vector.broadcast %12 : vector<1x128xf32> to vector<16x128xf32>
    %14 = arith.addf %11, %13 : vector<16x128xf32>
    %15 = arith.negf %14 : vector<16x128xf32>
    %16 = math.exp %15 : vector<16x128xf32>
    %cst_8 = arith.constant 1.000000e+00 : f32
    %17 = vector.broadcast %cst_8 : f32 to vector<16x128xf32>
    %18 = arith.addf %17, %16 : vector<16x128xf32>
    %19 = arith.divf %17, %18 : vector<16x128xf32>
    %20 = arith.mulf %14, %19 : vector<16x128xf32>
    %21 = arith.truncf %20 : vector<16x128xf32> to vector<16x128xbf16>
    %c0_9 = arith.constant 0 : index
    %c0_10 = arith.constant 0 : index
    %22 = vector.load %arg5[%c0_9, %c0_10] : memref<128x64xbf16, #tpu.memory_space<vmem>>, vector<128x64xbf16>
    %cst_11 = arith.constant dense<0.000000e+00> : vector<16x64xf32>
    %23 = tpu.matmul %21, %22, %cst_11 {dimension_numbers = #tpu.dot_dimension_numbers<[1], [0], [0], [1], [0, 0, 1, 1], [], []>} : vector<16x128xbf16>, vector<128x64xbf16>, vector<16x64xf32> -> vector<16x64xf32>
    %c0_12 = arith.constant 0 : index
    %c0_13 = arith.constant 0 : index
    %24 = vector.load %arg6[%c0_12, %c0_13] : memref<1x64xf32, #tpu.memory_space<vmem>>, vector<1x64xf32>
    %25 = vector.broadcast %24 : vector<1x64xf32> to vector<16x64xf32>
    %26 = arith.addf %23, %25 : vector<16x64xf32>
    %27 = arith.negf %26 : vector<16x64xf32>
    %28 = math.exp %27 : vector<16x64xf32>
    %cst_14 = arith.constant 1.000000e+00 : f32
    %29 = vector.broadcast %cst_14 : f32 to vector<16x64xf32>
    %30 = arith.addf %29, %28 : vector<16x64xf32>
    %31 = arith.divf %29, %30 : vector<16x64xf32>
    %32 = arith.mulf %26, %31 : vector<16x64xf32>
    %33 = arith.truncf %32 : vector<16x64xf32> to vector<16x64xbf16>
    %c0_15 = arith.constant 0 : index
    %c0_16 = arith.constant 0 : index
    %34 = vector.load %arg7[%c0_15, %c0_16] : memref<64x32xbf16, #tpu.memory_space<vmem>>, vector<64x32xbf16>
    %cst_17 = arith.constant dense<0.000000e+00> : vector<16x32xf32>
    %35 = tpu.matmul %33, %34, %cst_17 {dimension_numbers = #tpu.dot_dimension_numbers<[1], [0], [0], [1], [0, 0, 1, 1], [], []>} : vector<16x64xbf16>, vector<64x32xbf16>, vector<16x32xf32> -> vector<16x32xf32>
    %c0_18 = arith.constant 0 : index
    %c0_19 = arith.constant 0 : index
    %36 = vector.load %arg8[%c0_18, %c0_19] : memref<1x32xf32, #tpu.memory_space<vmem>>, vector<1x32xf32>
    %37 = vector.broadcast %36 : vector<1x32xf32> to vector<16x32xf32>
    %38 = arith.addf %35, %37 : vector<16x32xf32>
    %cst_20 = arith.constant dense<0.000000e+00> : vector<16xf32>
    %39 = vector.multi_reduction <add>, %38, %cst_20 [1] : vector<16x32xf32> to vector<16xf32>
    %40 = vector.shape_cast %39 : vector<16xf32> to vector<16x1xf32>
    %cst_21 = arith.constant 3.200000e+01 : f32
    %41 = vector.broadcast %cst_21 : f32 to vector<16x1xf32>
    %42 = arith.divf %40, %41 : vector<16x1xf32>
    %43 = vector.broadcast %42 : vector<16x1xf32> to vector<16x32xf32>
    %44 = arith.subf %38, %43 : vector<16x32xf32>
    %45 = vector.broadcast %42 : vector<16x1xf32> to vector<16x32xf32>
    %46 = arith.subf %38, %45 : vector<16x32xf32>
    %47 = arith.mulf %44, %46 : vector<16x32xf32>
    %cst_22 = arith.constant dense<0.000000e+00> : vector<16xf32>
    %48 = vector.multi_reduction <add>, %47, %cst_22 [1] : vector<16x32xf32> to vector<16xf32>
    %49 = vector.shape_cast %48 : vector<16xf32> to vector<16x1xf32>
    %cst_23 = arith.constant 3.200000e+01 : f32
    %50 = vector.broadcast %cst_23 : f32 to vector<16x1xf32>
    %51 = arith.divf %49, %50 : vector<16x1xf32>
    %52 = vector.broadcast %42 : vector<16x1xf32> to vector<16x32xf32>
    %53 = arith.subf %38, %52 : vector<16x32xf32>
    %cst_24 = arith.constant 9.99999974E-6 : f32
    %54 = vector.broadcast %cst_24 : f32 to vector<16x1xf32>
    %55 = arith.addf %51, %54 : vector<16x1xf32>
    %56 = math.rsqrt %55 : vector<16x1xf32>
    %57 = vector.broadcast %56 : vector<16x1xf32> to vector<16x32xf32>
    %58 = arith.mulf %53, %57 : vector<16x32xf32>
    %c0_25 = arith.constant 0 : index
    %c0_26 = arith.constant 0 : index
    %59 = vector.load %arg9[%c0_25, %c0_26] : memref<1x32xf32, #tpu.memory_space<vmem>>, vector<1x32xf32>
    %60 = vector.broadcast %59 : vector<1x32xf32> to vector<16x32xf32>
    %61 = arith.mulf %58, %60 : vector<16x32xf32>
    %c0_27 = arith.constant 0 : index
    %c0_28 = arith.constant 0 : index
    %62 = vector.load %arg10[%c0_27, %c0_28] : memref<1x32xf32, #tpu.memory_space<vmem>>, vector<1x32xf32>
    %63 = vector.broadcast %62 : vector<1x32xf32> to vector<16x32xf32>
    %64 = arith.addf %61, %63 : vector<16x32xf32>
    %c0_29 = arith.constant 0 : index
    %c0_30 = arith.constant 0 : index
    %65 = vector.load %arg11[%c0_29, %c0_30] : memref<16x32xf32, #tpu.memory_space<vmem>>, vector<16x32xf32>
    tpu.vector_store %arg11[%c0_29, %c0_30], %64 {strides = array<i32>} : memref<16x32xf32, #tpu.memory_space<vmem>>, vector<16x32xf32>,
    return
  }
  func.func @transform_0(%arg0: i32) -> (i32, i32) {
    %c0_i32 = arith.constant 0 : i32
    %c0_i32_0 = arith.constant 0 : i32
    return %arg0, %c0_i32 : i32, i32
  }
  func.func @transform_1(%arg0: i32) -> (i32, i32) {
    %c0_i32 = arith.constant 0 : i32
    %c0_i32_0 = arith.constant 0 : i32
    %c0_i32_1 = arith.constant 0 : i32
    return %c0_i32, %c0_i32_0 : i32, i32
  }
  func.func @transform_2(%arg0: i32) -> (i32, i32) {
    %c0_i32 = arith.constant 0 : i32
    %c0_i32_0 = arith.constant 0 : i32
    %c0_i32_1 = arith.constant 0 : i32
    return %c0_i32, %c0_i32_0 : i32, i32
  }
  func.func @transform_3(%arg0: i32) -> (i32, i32) {
    %c0_i32 = arith.constant 0 : i32
    %c0_i32_0 = arith.constant 0 : i32
    %c0_i32_1 = arith.constant 0 : i32
    return %c0_i32, %c0_i32_0 : i32, i32
  }
  func.func @transform_4(%arg0: i32) -> (i32, i32) {
    %c0_i32 = arith.constant 0 : i32
    %c0_i32_0 = arith.constant 0 : i32
    %c0_i32_1 = arith.constant 0 : i32
    return %c0_i32, %c0_i32_0 : i32, i32
  }
  func.func @transform_5(%arg0: i32) -> (i32, i32) {
    %c0_i32 = arith.constant 0 : i32
    %c0_i32_0 = arith.constant 0 : i32
    %c0_i32_1 = arith.constant 0 : i32
    return %c0_i32, %c0_i32_0 : i32, i32
  }
  func.func @transform_6(%arg0: i32) -> (i32, i32) {
    %c0_i32 = arith.constant 0 : i32
    %c0_i32_0 = arith.constant 0 : i32
    %c0_i32_1 = arith.constant 0 : i32
    return %c0_i32, %c0_i32_0 : i32, i32
  }
  func.func @transform_7(%arg0: i32) -> (i32, i32) {
    %c0_i32 = arith.constant 0 : i32
    %c0_i32_0 = arith.constant 0 : i32
    %c0_i32_1 = arith.constant 0 : i32
    return %c0_i32, %c0_i32_0 : i32, i32
  }
  func.func @transform_8(%arg0: i32) -> (i32, i32) {
    %c0_i32 = arith.constant 0 : i32
    %c0_i32_0 = arith.constant 0 : i32
    %c0_i32_1 = arith.constant 0 : i32
    return %c0_i32, %c0_i32_0 : i32, i32
  }
  func.func @transform_9(%arg0: i32) -> (i32, i32) {
    %c0_i32 = arith.constant 0 : i32
    %c0_i32_0 = arith.constant 0 : i32
    %c0_i32_1 = arith.constant 0 : i32
    return %c0_i32, %c0_i32_0 : i32, i32
  }
  func.func @transform_10(%arg0: i32) -> (i32, i32) {
    %c0_i32 = arith.constant 0 : i32
    %c0_i32_0 = arith.constant 0 : i32
    return %arg0, %c0_i32 : i32, i32
  }
}

</mosaic_0001>

<llo_original>
// kernel: tpu_custom_call.1
$region0: #{tpu_custom_call.1}
  #allocation0 [shape = 'u32[]', space=smem, size = 0x4, offset = 0x4, fixed_abs, tag = 'smem constant byte address 0x4 - core index']
  #allocation1 [shape = 'u32[144,128]{1,0:T(1,128)}', space=vmem, size = 0x12000, scoped, tag = 'internal scratch']
  %s0 = inlined_call_operand.vmem [shape: s32[16,1], index: 0, kind: input, shape index: {}]
  %s1 = inlined_call_operand.vmem [shape: bf16[2,128], index: 1, kind: input, shape index: {}]
  %s2 = inlined_call_operand.vmem [shape: bf16[128,128], index: 2, kind: input, shape index: {}]
  %s3 = inlined_call_operand.vmem [shape: f32[1,128], index: 3, kind: input, shape index: {}]
  %s4 = inlined_call_operand.vmem [shape: bf16[128,64], index: 4, kind: input, shape index: {}]
  %s5 = inlined_call_operand.vmem [shape: f32[1,64], index: 5, kind: input, shape index: {}]
  %s6 = inlined_call_operand.vmem [shape: bf16[64,32], index: 6, kind: input, shape index: {}]
  %s7 = inlined_call_operand.vmem [shape: f32[1,32], index: 7, kind: input, shape index: {}]
  %s8 = inlined_call_operand.vmem [shape: f32[1,32], index: 8, kind: input, shape index: {}]
  %s9 = inlined_call_operand.vmem [shape: f32[1,32], index: 9, kind: input, shape index: {}]
  %s10 = inlined_call_operand.hbm [shape: f32[16,32], index: 10, kind: output, shape index: {}]
  %s11 = sld [smem:[#allocation0]]
  $region50: #{tpu_custom_call.1} parent=0
    _
  %s13 = ssub.s32 1, %s11
  %s14 = scalar_select 0, %s13, %s11
  $region1: #{tpu_custom_call.1} parent=0
    #allocation2 [shape = 'u8[8192]{0}', space=vmem, size = 0x2000, scoped, tag = 'output window, operand 0, single buffered']
    #allocation3 [shape = 's32[1]{0}', space=sflag, size = 0x4, scoped, tag = 'scoped memory for tpu_custom_call.1']
    %15 = vsyncpa [#allocation3], 0
    // Predicated region
    $region2: #{tpu_custom_call.1} parent=1 // pred_check
      _
    $region3: #{tpu_custom_call.1} parent=1 // pred_check_branch
      %17 = sbr.rel (0) target = $region5
    $region4: #{tpu_custom_call.1} parent=1 // pred_region
      _
    $region5: #{tpu_custom_call.1} parent=1 // pred_fallthru
      _
    // Predicated region
    $region6: #{tpu_custom_call.1} parent=1 // pred_check
      _
    $region7: #{tpu_custom_call.1} parent=1 // pred_check_branch
      %19 = sbr.rel (0) target = $region9
    $region8: #{tpu_custom_call.1} parent=1 // pred_region
      _
    $region9: #{tpu_custom_call.1} parent=1 // pred_fallthru
      _
    // Predicated region
    $region10: #{tpu_custom_call.1} parent=1 // pred_check
      _
    $region11: #{tpu_custom_call.1} parent=1 // pred_check_branch
      %21 = sbr.rel (0) target = $region13
    $region12: #{tpu_custom_call.1} parent=1 // pred_region
      _
    $region13: #{tpu_custom_call.1} parent=1 // pred_fallthru
      _
    // Predicated region
    $region14: #{tpu_custom_call.1} parent=1 // pred_check
      _
    $region15: #{tpu_custom_call.1} parent=1 // pred_check_branch
      %23 = sbr.rel (0) target = $region17
    $region16: #{tpu_custom_call.1} parent=1 // pred_region
      _
    $region17: #{tpu_custom_call.1} parent=1 // pred_fallthru
      _
    // Predicated region
    $region18: #{tpu_custom_call.1} parent=1 // pred_check
      _
    $region19: #{tpu_custom_call.1} parent=1 // pred_check_branch
      %25 = sbr.rel (0) target = $region21
    $region20: #{tpu_custom_call.1} parent=1 // pred_region
      _
    $region21: #{tpu_custom_call.1} parent=1 // pred_fallthru
      _
    // Predicated region
    $region22: #{tpu_custom_call.1} parent=1 // pred_check
      _
    $region23: #{tpu_custom_call.1} parent=1 // pred_check_branch
      %27 = sbr.rel (0) target = $region25
    $region24: #{tpu_custom_call.1} parent=1 // pred_region
      _
    $region25: #{tpu_custom_call.1} parent=1 // pred_fallthru
      _
    // Predicated region
    $region26: #{tpu_custom_call.1} parent=1 // pred_check
      _
    $region27: #{tpu_custom_call.1} parent=1 // pred_check_branch
      %29 = sbr.rel (0) target = $region29
    $region28: #{tpu_custom_call.1} parent=1 // pred_region
      _
    $region29: #{tpu_custom_call.1} parent=1 // pred_fallthru
      _
    // Predicated region
    $region30: #{tpu_custom_call.1} parent=1 // pred_check
      _
    $region31: #{tpu_custom_call.1} parent=1 // pred_check_branch
      %31 = sbr.rel (0) target = $region33
    $region32: #{tpu_custom_call.1} parent=1 // pred_region
      _
    $region33: #{tpu_custom_call.1} parent=1 // pred_fallthru
      _
    // Predicated region
    $region34: #{tpu_custom_call.1} parent=1 // pred_check
      _
    $region35: #{tpu_custom_call.1} parent=1 // pred_check_branch
      %33 = sbr.rel (0) target = $region37
    $region36: #{tpu_custom_call.1} parent=1 // pred_region
      _
    $region37: #{tpu_custom_call.1} parent=1 // pred_fallthru
      _
    // Predicated region
    $region38: #{tpu_custom_call.1} parent=1 // pred_check
      _
    $region39: #{tpu_custom_call.1} parent=1 // pred_check_branch
      %35 = sbr.rel (0) target = $region41
    $region40: #{tpu_custom_call.1} parent=1 // pred_region
      _
    $region41: #{tpu_custom_call.1} parent=1 // pred_fallthru
      _
    %v37 = vlaneseq
    %v38 = vand.u32 %v37, 127
    %v39 = vld [vmem:[%s0] sm:$0xff]
    %v40 = vld [vmem:[%s0 + $0x8] sm:$0xff]
    %41 = vset.pattern.permute.xlu0 0
    %42 = vperm.xlu0 %41, %v39
    %v43 = vpop.permute.xlu0 %42
    %44 = vset.pattern.permute.xlu0 0
    %45 = vperm.xlu0 %44, %v40
    %v46 = vpop.permute.xlu0 %45
    %vm47 = vcmp.eq.s32.totalorder %v43, %v38
    %vm48 = vcmp.eq.s32.totalorder %v46, %v38
    %v49 = vsel %vm47, 1, 0
    %v50 = vsel %vm48, 1, 0
    %v51 = vcvt.s32.f32 %v49
    %v52 = vcvt.s32.f32 %v50
    %v53 = vld [vmem:[%s1] sm:$0x1]
    %v54 = vunpack.c.l.bf16 %v53
    %vm55 = vcmask 15360
    %v57 = vsel %vm55, %v51, 0
    %v60 = vsel %vm55, %v52, 0
    %vm62 = vcmask 1041408
    %v64 = vsel %vm62, %v54, 0
    %66 = vmatprep.subr.mxu0 0.0
    %67 = vmatpush1.msra.mxu0 0.0
    %68 = vmatprep.subr.mxu0 0.0
    %69 = vmatpush1.msra.mxu0 0.0
    %70 = vmatprep.subr.mxu0 0.0
    %71 = vmatpush1.msra.mxu0 0.0
    %72 = vmatprep.subr.mxu0 0.0
    %73 = vmatpush1.msra.mxu0 0.0
    %74 = vmatprep.subr.mxu0 0.0
    %75 = vmatpush1.msra.mxu0 0.0
    %76 = vmatprep.subr.mxu0 0.0
    %77 = vmatpush1.msra.mxu0 0.0
    %78 = vmatprep.subr.mxu0 0.0
    %79 = vmatpush1.msra.mxu0 0.0
    %80 = vmatprep.subr.mxu0 0.0
    %81 = vmatpush1.msra.mxu0 0.0
    %82 = vmatprep.subr.mxu0 0.0
    %83 = vmatpush1.msra.mxu0 0.0
    %84 = vmatprep.subr.mxu0 0.0
    %85 = vmatpush1.msra.mxu0 0.0
    %86 = vmatprep.subr.mxu0 0.0
    %87 = vmatpush1.msra.mxu0 0.0
    %88 = vmatprep.subr.mxu0 0.0
    %89 = vmatpush1.msra.mxu0 0.0
    %90 = vmatprep.subr.mxu0 0.0
    %91 = vmatpush1.msra.mxu0 0.0
    %92 = vmatprep.subr.mxu0 0.0
    %93 = vmatpush1.msra.mxu0 0.0
    %94 = vmatprep.subr.mxu0 0.0
    %95 = vmatpush1.msra.mxu0 0.0
    %96 = vmatprep.subr.mxu0 0.0
    %97 = vmatpush1.msra.mxu0 %v64
    %98 = vmatprep.subr.mxu0 0.0
    %99 = vmatpush2.msra.mxu0 0.0
    %100 = vmatprep.subr.mxu0 0.0
    %101 = vmatpush2.msra.mxu0 0.0
    %102 = vmatprep.subr.mxu0 0.0
    %103 = vmatpush2.msra.mxu0 0.0
    %104 = vmatprep.subr.mxu0 0.0
    %105 = vmatpush2.msra.mxu0 0.0
    %106 = vmatprep.subr.mxu0 0.0
    %107 = vmatpush2.msra.mxu0 0.0
    %108 = vmatprep.subr.mxu0 0.0
    %109 = vmatpush2.msra.mxu0 0.0
    %110 = vmatprep.subr.mxu0 0.0
    %111 = vmatpush2.msra.mxu0 0.0
    %112 = vmatprep.subr.mxu0 0.0
    %113 = vmatpush2.msra.mxu0 0.0
    %114 = vmatprep.subr.mxu0 0.0
    %115 = vmatpush2.msra.mxu0 0.0
    %116 = vmatprep.subr.mxu0 0.0
    %117 = vmatpush2.msra.mxu0 0.0
    %118 = vmatprep.subr.mxu0 0.0
    %119 = vmatpush2.msra.mxu0 0.0
    %120 = vmatprep.subr.mxu0 0.0
    %121 = vmatpush2.msra.mxu0 0.0
    %122 = vmatprep.subr.mxu0 0.0
    %123 = vmatpush2.msra.mxu0 0.0
    %124 = vmatprep.subr.mxu0 0.0
    %125 = vmatpush2.msra.mxu0 0.0
    %126 = vmatprep.subr.mxu0 0.0
    %127 = vmatpush2.msra.mxu0 0.0
    %128 = vmatprep.subr.mxu0 0.0
    %129 = vmatpush2.msra.mxu0 0.0
    %130 = vmatprep.mubr.f32.mxu0 0.0
    %131 = vmatmul.mubr.f32.gmra.mxu0 %v57
    %v132 = vpop.f32.mrf.mxu0
    %v133 = vadd.f32 0.0, %v132
    %v134 = vpop.f32.mrf.mxu0
    %135 = vmatprep.mubr.f32.mxu0 0.0
    %136 = vmatmul.mubr.f32.gmra.mxu0 %v60
    %v137 = vpop.f32.mrf.mxu0
    %v138 = vadd.f32 0.0, %v137
    %v139 = vpop.f32.mrf.mxu0
    %140 = vdwg.mxu0
    %v141 = vpack.c.bf16 %v138, %v133
    %v142 = vld [vmem:[%s2] sm:$0xf]
    %v143 = vld [vmem:[%s2 + $0x4] sm:$0xf]
    %v144 = vld [vmem:[%s2 + $0x8] sm:$0xf]
    %v145 = vld [vmem:[%s2 + $0xc] sm:$0xf]
    %v146 = vld [vmem:[%s2 + $0x10] sm:$0xf]
    %v147 = vld [vmem:[%s2 + $0x14] sm:$0xf]
    %v148 = vld [vmem:[%s2 + $0x18] sm:$0xf]
    %v149 = vld [vmem:[%s2 + $0x1c] sm:$0xf]
    %v150 = vld [vmem:[%s2 + $0x20] sm:$0xf]
    %v151 = vld [vmem:[%s2 + $0x24] sm:$0xf]
    %v152 = vld [vmem:[%s2 + $0x28] sm:$0xf]
    %v153 = vld [vmem:[%s2 + $0x2c] sm:$0xf]
    %v154 = vld [vmem:[%s2 + $0x30] sm:$0xf]
    %v155 = vld [vmem:[%s2 + $0x34] sm:$0xf]
    %v156 = vld [vmem:[%s2 + $0x38] sm:$0xf]
    %v157 = vld [vmem:[%s2 + $0x3c] sm:$0xf]
    %v158 = vld [vmem:[%s3] sm:$0x1]
    %v160 = vlaneseq
    %v161 = vshrl.u32 %v160, 7
    %v162 = vsub.s32 0, %v161
    %v163 = vrot.slane %v158, %v162
    %v181 = vunpack.c.l.b16 %v142
    %v182 = vunpack.c.l.b16 %v143
    %v183 = vunpack.c.l.b16 %v144
    %v184 = vunpack.c.l.b16 %v145
    %v185 = vunpack.c.l.b16 %v146
    %v186 = vunpack.c.l.b16 %v147
    %v187 = vunpack.c.l.b16 %v148
    %v188 = vunpack.c.l.b16 %v149
    %v189 = vunpack.c.l.b16 %v150
    %v190 = vunpack.c.l.b16 %v151
    %v191 = vunpack.c.l.b16 %v152
    %v192 = vunpack.c.l.b16 %v153
    %v193 = vunpack.c.l.b16 %v154
    %v194 = vunpack.c.l.b16 %v155
    %v195 = vunpack.c.l.b16 %v156
    %v196 = vunpack.c.l.b16 %v157
    %v197 = vpack.c.b16 %v182, %v181
    %v198 = vpack.c.b16 %v184, %v183
    %v199 = vpack.c.b16 %v186, %v185
    %v200 = vpack.c.b16 %v188, %v187
    %v201 = vpack.c.b16 %v190, %v189
    %v202 = vpack.c.b16 %v192, %v191
    %v203 = vpack.c.b16 %v194, %v193
    %v204 = vpack.c.b16 %v196, %v195
    %213 = vmatprep.subr.bf16.mxu0 0
    %214 = vmatpush1.bf16.msra.mxu0 %v204
    %215 = vmatprep.subr.bf16.mxu0 0
    %216 = vmatpush1.bf16.msra.mxu0 %v203
    %217 = vmatprep.subr.bf16.mxu0 0
    %218 = vmatpush1.bf16.msra.mxu0 %v202
    %219 = vmatprep.subr.bf16.mxu0 0
    %220 = vmatpush1.bf16.msra.mxu0 %v201
    %221 = vmatprep.subr.bf16.mxu0 0
    %222 = vmatpush1.bf16.msra.mxu0 %v200
    %223 = vmatprep.subr.bf16.mxu0 0
    %224 = vmatpush1.bf16.msra.mxu0 %v199
    %225 = vmatprep.subr.bf16.mxu0 0
    %226 = vmatpush1.bf16.msra.mxu0 %v198
    %227 = vmatprep.subr.bf16.mxu0 0
    %228 = vmatpush1.bf16.msra.mxu0 %v197
    %229 = vmatprep.subr.bf16.mxu0 0
    %230 = vmatpush2.bf16.msra.mxu0 0
    %231 = vmatprep.subr.bf16.mxu0 0
    %232 = vmatpush2.bf16.msra.mxu0 0
    %233 = vmatprep.subr.bf16.mxu0 0
    %234 = vmatpush2.bf16.msra.mxu0 0
    %235 = vmatprep.subr.bf16.mxu0 0
    %236 = vmatpush2.bf16.msra.mxu0 0
    %237 = vmatprep.subr.bf16.mxu0 0
    %238 = vmatpush2.bf16.msra.mxu0 0
    %239 = vmatprep.subr.bf16.mxu0 0
    %240 = vmatpush2.bf16.msra.mxu0 0
    %241 = vmatprep.subr.bf16.mxu0 0
    %242 = vmatpush2.bf16.msra.mxu0 0
    %243 = vmatprep.subr.bf16.mxu0 0
    %244 = vmatpush2.bf16.msra.mxu0 0
    %245 = vmatprep.mubr.bf16.mxu0 0
    %246 = vmatmul.mubr.bf16.gmra.mxu0 %v141
    %v247 = vpop.f32.mrf.mxu0
    %v248 = vadd.f32 %v163, %v247
    %v249 = vpop.f32.mrf.mxu0
    %v250 = vpop.f32.mrf.mxu0
    %v251 = vadd.f32 %v163, %v250
    %v252 = vpop.f32.mrf.mxu0
    %253 = vdwg.mxu0
    %v254 = vxor.u32 %v248, 2147483648
    %v255 = vxor.u32 %v251, 2147483648
    %v256 = vmul.f32 %v254, 1.442695
    %v257 = vpow.pop %v256
    %v258 = vmul.f32 %v255, 1.442695
    %v259 = vpow.pop %v258
    %v260 = vadd.f32 %v257, 1.0
    %v261 = vadd.f32 %v259, 1.0
    %v262 = vrcp.pop %v260
    %v263 = vmul.f32 1.0, %v262
    %v264 = vrcp.pop %v261
    %v265 = vmul.f32 1.0, %v264
    %v266 = vmul.f32 %v248, %v263
    %v267 = vmul.f32 %v251, %v265
    %v268 = vpack.c.bf16 %v267, %v266
    %v269 = vld [vmem:[%s4] sm:$0xf]
    %v270 = vld [vmem:[%s4 + $0x4] sm:$0xf]
    %v271 = vld [vmem:[%s4 + $0x8] sm:$0xf]
    %v272 = vld [vmem:[%s4 + $0xc] sm:$0xf]
    %v273 = vld [vmem:[%s4 + $0x10] sm:$0xf]
    %v274 = vld [vmem:[%s4 + $0x14] sm:$0xf]
    %v275 = vld [vmem:[%s4 + $0x18] sm:$0xf]
    %v276 = vld [vmem:[%s4 + $0x1c] sm:$0xf]
    %v277 = vld [vmem:[%s4 + $0x20] sm:$0xf]
    %v278 = vld [vmem:[%s4 + $0x24] sm:$0xf]
    %v279 = vld [vmem:[%s4 + $0x28] sm:$0xf]
    %v280 = vld [vmem:[%s4 + $0x2c] sm:$0xf]
    %v281 = vld [vmem:[%s4 + $0x30] sm:$0xf]
    %v282 = vld [vmem:[%s4 + $0x34] sm:$0xf]
    %v283 = vld [vmem:[%s4 + $0x38] sm:$0xf]
    %v284 = vld [vmem:[%s4 + $0x3c] sm:$0xf]
    %v285 = vld [vmem:[%s5] sm:$0x1]
    %v287 = vlaneseq
    %v288 = vshrl.u32 %v287, 7
    %v289 = vsub.s32 0, %v288
    %v290 = vrot.slane %v285, %v289
    %v308 = vunpack.c.l.b16 %v269
    %v309 = vunpack.c.l.b16 %v270
    %v310 = vunpack.c.l.b16 %v271
    %v311 = vunpack.c.l.b16 %v272
    %v312 = vunpack.c.l.b16 %v273
    %v313 = vunpack.c.l.b16 %v274
    %v314 = vunpack.c.l.b16 %v275
    %v315 = vunpack.c.l.b16 %v276
    %v316 = vunpack.c.l.b16 %v277
    %v317 = vunpack.c.l.b16 %v278
    %v318 = vunpack.c.l.b16 %v279
    %v319 = vunpack.c.l.b16 %v280
    %v320 = vunpack.c.l.b16 %v281
    %v321 = vunpack.c.l.b16 %v282
    %v322 = vunpack.c.l.b16 %v283
    %v323 = vunpack.c.l.b16 %v284
    %v324 = vpack.c.b16 %v309, %v308
    %v325 = vpack.c.b16 %v311, %v310
    %v326 = vpack.c.b16 %v313, %v312
    %v327 = vpack.c.b16 %v315, %v314
    %v328 = vpack.c.b16 %v317, %v316
    %v329 = vpack.c.b16 %v319, %v318
    %v330 = vpack.c.b16 %v321, %v320
    %v331 = vpack.c.b16 %v323, %v322
    %340 = vmatprep.subr.bf16.mxu0 0
    %341 = vmatpush1.bf16.msra.mxu0 %v331
    %342 = vmatprep.subr.bf16.mxu0 0
    %343 = vmatpush1.bf16.msra.mxu0 %v330
    %344 = vmatprep.subr.bf16.mxu0 0
    %345 = vmatpush1.bf16.msra.mxu0 %v329
    %346 = vmatprep.subr.bf16.mxu0 0
    %347 = vmatpush1.bf16.msra.mxu0 %v328
    %348 = vmatprep.subr.bf16.mxu0 0
    %349 = vmatpush1.bf16.msra.mxu0 %v327
    %350 = vmatprep.subr.bf16.mxu0 0
    %351 = vmatpush1.bf16.msra.mxu0 %v326
    %352 = vmatprep.subr.bf16.mxu0 0
    %353 = vmatpush1.bf16.msra.mxu0 %v325
    %354 = vmatprep.subr.bf16.mxu0 0
    %355 = vmatpush1.bf16.msra.mxu0 %v324
    %356 = vmatprep.subr.bf16.mxu0 0
    %357 = vmatpush2.bf16.msra.mxu0 0
    %358 = vmatprep.subr.bf16.mxu0 0
    %359 = vmatpush2.bf16.msra.mxu0 0
    %360 = vmatprep.subr.bf16.mxu0 0
    %361 = vmatpush2.bf16.msra.mxu0 0
    %362 = vmatprep.subr.bf16.mxu0 0
    %363 = vmatpush2.bf16.msra.mxu0 0
    %364 = vmatprep.subr.bf16.mxu0 0
    %365 = vmatpush2.bf16.msra.mxu0 0
    %366 = vmatprep.subr.bf16.mxu0 0
    %367 = vmatpush2.bf16.msra.mxu0 0
    %368 = vmatprep.subr.bf16.mxu0 0
    %369 = vmatpush2.bf16.msra.mxu0 0
    %370 = vmatprep.subr.bf16.mxu0 0
    %371 = vmatpush2.bf16.msra.mxu0 0
    %372 = vmatprep.mubr.bf16.mxu0 0
    %373 = vmatmul.mubr.bf16.gmra.mxu0 %v268
    %v374 = vpop.f32.mrf.mxu0
    %v375 = vadd.f32 %v290, %v374
    %v376 = vpop.f32.mrf.mxu0
    %v377 = vpop.f32.mrf.mxu0
    %v378 = vadd.f32 %v290, %v377
    %v379 = vpop.f32.mrf.mxu0
    %380 = vdwg.mxu0
    %v381 = vxor.u32 %v375, 2147483648
    %v382 = vxor.u32 %v378, 2147483648
    %v383 = vmul.f32 %v381, 1.442695
    %v384 = vpow.pop %v383
    %v385 = vmul.f32 %v382, 1.442695
    %v386 = vpow.pop %v385
    %v387 = vadd.f32 %v384, 1.0
    %v388 = vadd.f32 %v386, 1.0
    %v389 = vrcp.pop %v387
    %v390 = vmul.f32 1.0, %v389
    %v391 = vrcp.pop %v388
    %v392 = vmul.f32 1.0, %v391
    %v393 = vmul.f32 %v375, %v390
    %v394 = vmul.f32 %v378, %v392
    %v395 = vpack.c.bf16 %v394, %v393
    %v396 = vld [vmem:[%s6] sm:$0xf]
    %v397 = vld [vmem:[%s6 + $0x4] sm:$0xf]
    %v398 = vld [vmem:[%s6 + $0x8] sm:$0xf]
    %v399 = vld [vmem:[%s6 + $0xc] sm:$0xf]
    %v400 = vld [vmem:[%s6 + $0x10] sm:$0xf]
    %v401 = vld [vmem:[%s6 + $0x14] sm:$0xf]
    %v402 = vld [vmem:[%s6 + $0x18] sm:$0xf]
    %v403 = vld [vmem:[%s6 + $0x1c] sm:$0xf]
    %v404 = vld [vmem:[%s7] sm:$0x1]
    %v406 = vlaneseq
    %v407 = vshrl.u32 %v406, 7
    %v408 = vsub.s32 0, %v407
    %v409 = vrot.slane %v404, %v408
    %v419 = vunpack.c.l.b16 %v396
    %v420 = vunpack.c.l.b16 %v397
    %v421 = vunpack.c.l.b16 %v398
    %v422 = vunpack.c.l.b16 %v399
    %v423 = vunpack.c.l.b16 %v400
    %v424 = vunpack.c.l.b16 %v401
    %v425 = vunpack.c.l.b16 %v402
    %v426 = vunpack.c.l.b16 %v403
    %v427 = vpack.c.b16 %v420, %v419
    %v428 = vpack.c.b16 %v422, %v421
    %v429 = vpack.c.b16 %v424, %v423
    %v430 = vpack.c.b16 %v426, %v425
    %vm435 = vcmask 523264
    %v437 = vsel %vm435, %v395, 0
    %439 = vmatprep.subr.bf16.mxu0 0
    %440 = vmatpush1.bf16.msra.mxu0 0
    %441 = vmatprep.subr.bf16.mxu0 0
    %442 = vmatpush1.bf16.msra.mxu0 0
    %443 = vmatprep.subr.bf16.mxu0 0
    %444 = vmatpush1.bf16.msra.mxu0 0
    %445 = vmatprep.subr.bf16.mxu0 0
    %446 = vmatpush1.bf16.msra.mxu0 0
    %447 = vmatprep.subr.bf16.mxu0 0
    %448 = vmatpush1.bf16.msra.mxu0 %v430
    %449 = vmatprep.subr.bf16.mxu0 0
    %450 = vmatpush1.bf16.msra.mxu0 %v429
    %451 = vmatprep.subr.bf16.mxu0 0
    %452 = vmatpush1.bf16.msra.mxu0 %v428
    %453 = vmatprep.subr.bf16.mxu0 0
    %454 = vmatpush1.bf16.msra.mxu0 %v427
    %455 = vmatprep.subr.bf16.mxu0 0
    %456 = vmatpush2.bf16.msra.mxu0 0
    %457 = vmatprep.subr.bf16.mxu0 0
    %458 = vmatpush2.bf16.msra.mxu0 0
    %459 = vmatprep.subr.bf16.mxu0 0
    %460 = vmatpush2.bf16.msra.mxu0 0
    %461 = vmatprep.subr.bf16.mxu0 0
    %462 = vmatpush2.bf16.msra.mxu0 0
    %463 = vmatprep.subr.bf16.mxu0 0
    %464 = vmatpush2.bf16.msra.mxu0 0
    %465 = vmatprep.subr.bf16.mxu0 0
    %466 = vmatpush2.bf16.msra.mxu0 0
    %467 = vmatprep.subr.bf16.mxu0 0
    %468 = vmatpush2.bf16.msra.mxu0 0
    %469 = vmatprep.subr.bf16.mxu0 0
    %470 = vmatpush2.bf16.msra.mxu0 0
    %471 = vmatprep.mubr.bf16.mxu0 0
    %472 = vmatmul.mubr.bf16.gmra.mxu0 %v437
    %v473 = vpop.f32.mrf.mxu0
    %v474 = vadd.f32 %v409, %v473
    %v475 = vpop.f32.mrf.mxu0
    %v476 = vpop.f32.mrf.mxu0
    %v477 = vadd.f32 %v409, %v476
    %v478 = vpop.f32.mrf.mxu0
    %479 = vdwg.mxu0
    %vm480 = vcmask 261120
    %v481 = vsel %vm480, %v474, 0.0
    %482 = vadd.xlane.f32.xlu0 %v481
    %v483 = vpop.xlane.xlu0 %482
    %v484 = vsel %vm480, %v477, 0.0
    %485 = vadd.xlane.f32.xlu0 %v484
    %v486 = vpop.xlane.xlu0 %485
    %v487 = vrcp.pop 32.0
    %v488 = vmul.f32 %v483, %v487
    %v489 = vmul.f32 %v486, %v487
    %v490 = vsub.f32 %v474, %v488
    %v491 = vsub.f32 %v477, %v489
    %v492 = vmul.f32 %v490, %v490
    %v493 = vmul.f32 %v491, %v491
    %v494 = vsel %vm480, %v492, 0.0
    %495 = vadd.xlane.f32.xlu0 %v494
    %v496 = vpop.xlane.xlu0 %495
    %v497 = vsel %vm480, %v493, 0.0
    %498 = vadd.xlane.f32.xlu0 %v497
    %v499 = vpop.xlane.xlu0 %498
    %v500 = vmul.f32 %v496, %v487
    %v501 = vmul.f32 %v499, %v487
    %v502 = vadd.f32 %v500, 1e-05
    %v503 = vadd.f32 %v501, 1e-05
    %v504 = vrsqrt.pop %v502
    %v505 = vrsqrt.pop %v503
    %v506 = vmul.f32 %v490, %v504
    %v507 = vmul.f32 %v491, %v505
    %v508 = vld [vmem:[%s8] sm:$0x1]
    %v510 = vlaneseq
    %v511 = vshrl.u32 %v510, 7
    %v512 = vsub.s32 0, %v511
    %v513 = vrot.slane %v508, %v512
    %v515 = vmul.f32 %v506, %v513
    %v516 = vmul.f32 %v507, %v513
    %v517 = vld [vmem:[%s9] sm:$0x1]
    %v519 = vlaneseq
    %v520 = vshrl.u32 %v519, 7
    %v521 = vsub.s32 0, %v520
    %v522 = vrot.slane %v517, %v521
    %v524 = vadd.f32 %v515, %v522
    %v525 = vadd.f32 %v516, %v522
    %526 = vst.msk [vmem:[#allocation2] sm:$0xff] %vm480, %v524
    %527 = vst.msk [vmem:[#allocation2 + $0x8] sm:$0xff] %vm480, %v525
    // Predicated region
    $region42: #{tpu_custom_call.1} parent=1 // pred_check
      _
    $region43: #{tpu_custom_call.1} parent=1 // pred_check_branch
      %529 = sbr.rel (0) target = $region45
    $region44: #{tpu_custom_call.1} parent=1 // pred_region
      %s531 = ssub.s32 256, 256
      %532 = vsyncadd [#allocation3], %s531
      %s533 = sshll.u32 [#allocation2], 4
      %s534 = int_to_ptr.vmem [resolvable:$true] %s533
      %539 = dma.vmem_to_hbm [thread:$0]  %s534, 256, %s10, [#allocation3], 128, 128, 8
    $region45: #{tpu_custom_call.1} parent=1 // pred_fallthru
      _
    // Predicated region
    $region46: #{tpu_custom_call.1} parent=1 // pred_check
      _
    $region47: #{tpu_custom_call.1} parent=1 // pred_check_branch
      %541 = sbr.rel (0) target = $region49
    $region48: #{tpu_custom_call.1} parent=1 // pred_region
      %542 = dma.done [#allocation3], 256
    $region49: #{tpu_custom_call.1} parent=1 // pred_fallthru
      _
    %543 = vsyncpa [#allocation3], 1

</llo_original>
